<compile_context>
chip_gen: v7x
topology: tpu7x:2x2x1
jax: 0.10.0
libtpu: 0.0.40
codegen_flags: <defaults>
</compile_context>

<pallas_src>
import functools

import jax
import jax.numpy as jnp
from jax.experimental import pallas as pl
from jax.experimental.pallas import tpu as pltpu


# --------------------------------------------------------------------------- #
# Kernels
# --------------------------------------------------------------------------- #
def _join_concat_kernel(x_ref, m_ref, w_ref, b_ref, o_ref, j_ref, *,
                        valid_rows, tb):
    """cat(x, m) staged into a bf16 VMEM slab -> single K=Dx+Dm MXU matmul."""
    dx = x_ref.shape[1]

    # torch.cat((x, m), 1) as two contiguous, lane-aligned stores (no XLU).
    j_ref[:, :dx] = x_ref[...].astype(j_ref.dtype)
    j_ref[:, dx:] = m_ref[...].astype(j_ref.dtype)

    # One K = Dx+Dm bf16 MXU matmul, f32 accumulation.
    acc = jnp.dot(j_ref[...], w_ref[...], preferred_element_type=jnp.float32)

    # Bias + ReLU in f32 on the VPU.
    out = jnp.maximum(acc + b_ref[...], 0.0)

    if valid_rows is not None:  # zero padded batch rows (static branch)
        row = pl.program_id(0) * tb + jax.lax.broadcasted_iota(
            jnp.int32, out.shape, 0)
        out = jnp.where(row < valid_rows, out, 0.0)

    o_ref[...] = out.astype(o_ref.dtype)


def _join_split_kernel(x_ref, m_ref, w_ref, b_ref, o_ref, *,
                       dx, valid_rows, tb):
    """Split-accumulate form: dot(x, w[:Dx]) + dot(m, w[Dx:]) (v5e / unaligned Dx)."""
    acc = jnp.dot(x_ref[...].astype(jnp.bfloat16), w_ref[:dx, :],
                  preferred_element_type=jnp.float32)
    acc = acc + jnp.dot(m_ref[...].astype(jnp.bfloat16), w_ref[dx:, :],
                        preferred_element_type=jnp.float32)

    out = jnp.maximum(acc + b_ref[...], 0.0)

    if valid_rows is not None:  # zero padded batch rows (static branch)
        row = pl.program_id(0) * tb + jax.lax.broadcasted_iota(
            jnp.int32, out.shape, 0)
        out = jnp.where(row < valid_rows, out, 0.0)

    o_ref[...] = out.astype(o_ref.dtype)


# --------------------------------------------------------------------------- #
# Wrapper
# --------------------------------------------------------------------------- #
def prepare_join_params(w, b):
    """Hoisted, one-time param prep: bf16 weight for the MXU, (1, H) f32 bias."""
    _, h = w.shape
    return w.astype(jnp.bfloat16), b.reshape(1, h).astype(jnp.float32)


def _device_is_v5e():
    try:
        kind = jax.devices()[0].device_kind.lower()
    except Exception:
        return False
    return ("v5e" in kind) or ("v5 lite" in kind) or ("v5litepod" in kind)


def join_forward(x, m, w, b, *, tb=None, use_concat=None,
                 out_dtype=jnp.float32):
    """Join ('cat' mode) + Linear(Dx+Dm -> H) + ReLU.

    x: (B, Dx), m: (B, Dm), w: (Dx+Dm, H) [prefer pre-cast bf16],
    b: (H,) or (1, H)  ->  (B, H) in `out_dtype`.
    """
    B, Dx = x.shape
    Bm, Dm = m.shape
    assert Bm == B, "x and m must share the batch dimension"
    Din, H = w.shape
    assert Din == Dx + Dm, "weight must be (Dx+Dm, H)"

    # Fallback param prep -- prefer prepare_join_params() once, outside the call.
    if w.dtype != jnp.bfloat16:
        w = w.astype(jnp.bfloat16)
    if b.ndim == 1:
        b = b.reshape(1, H)
    if b.dtype != jnp.float32:
        b = b.astype(jnp.float32)

    # Kernel-form selection: single K=Dx+Dm matmul only when Dx is a lane
    # multiple (unmasked stores) and the MXU is 256-deep (not v5e).
    if use_concat is None:
        use_concat = (Dx % 128 == 0) and not _device_is_v5e()

    # Batch tile: whole batch when small (launch-bound), big tiles + >=2 grid
    # steps for v7x Megacore when B is large.
    if tb is None:
        if B <= 256:
            tb = B
        elif B <= 1024:
            tb = 256
        else:
            tb = 512
    tb = max(1, min(tb, B))

    n_tiles = pl.cdiv(B, tb)
    Bp = n_tiles * tb
    padded = Bp != B
    if padded:
        x = jnp.pad(x, ((0, Bp - B), (0, 0)))
        m = jnp.pad(m, ((0, Bp - B), (0, 0)))
    valid_rows = B if padded else None

    in_specs = [
        pl.BlockSpec((tb, Dx), lambda i: (i, 0)),
        pl.BlockSpec((tb, Dm), lambda i: (i, 0)),
        pl.BlockSpec((Din, H), lambda i: (0, 0)),   # grid-invariant weight
        pl.BlockSpec((1, H), lambda i: (0, 0)),     # grid-invariant bias
    ]
    out_specs = pl.BlockSpec((tb, H), lambda i: (i, 0))

    if use_concat:
        kernel = functools.partial(_join_concat_kernel,
                                   valid_rows=valid_rows, tb=tb)
        scratch_shapes = [pltpu.VMEM((tb, Din), jnp.bfloat16)]
    else:
        kernel = functools.partial(_join_split_kernel,
                                   dx=Dx, valid_rows=valid_rows, tb=tb)
        scratch_shapes = []

    out = pl.pallas_call(
        kernel,
        out_shape=jax.ShapeDtypeStruct((Bp, H), out_dtype),
        grid=(n_tiles,),
        in_specs=in_specs,
        out_specs=out_specs,
        scratch_shapes=scratch_shapes,
        compiler_params=pltpu.CompilerParams(
            dimension_semantics=("parallel",)),
    )(x, m, w, b)

    return out[:B] if padded else out


# --------------------------------------------------------------------------- #
# Self-test
# --------------------------------------------------------------------------- #
if __name__ == "__main__":
    # Small CILRS-like shapes: perception features Dx, measurement features Dm.
    B, Dx, Dm, H = 16, 128, 128, 128

    key = jax.random.PRNGKey(0)
    kx, km, kw, kb = jax.random.split(key, 4)

    x = jax.random.normal(kx, (B, Dx), dtype=jnp.float32)
    m = jax.random.normal(km, (B, Dm), dtype=jnp.float32)

    # Deterministic Linear(Dx+Dm -> H) params (nn.Linear-style uniform init).
    fan_in = Dx + Dm
    bound = 1.0 / jnp.sqrt(jnp.float32(fan_in))
    w = jax.random.uniform(kw, (fan_in, H), jnp.float32, -bound, bound)
    b = jax.random.uniform(kb, (H,), jnp.float32, -bound, bound)

    # Params prepared ONCE (weight cast / bias reshape hoisted off the hot path).
    w_bf, b2 = prepare_join_params(w, b)

    # Reference: literal cat -> linear -> relu in f32 (bf16 MXU operands ->
    # slightly looser tolerance than a pure-f32 kernel).
    ref = jnp.maximum(jnp.concatenate([x, m], axis=1) @ w + b, 0.0)

    # Concat (single K = Dx+Dm matmul) path -- default on v6e / v7x.
    out_cat = jax.block_until_ready(
        join_forward(x, m, w_bf, b2, use_concat=True))
    assert out_cat.shape == ref.shape, "shape mismatch vs reference"
    assert jnp.allclose(out_cat, ref, atol=5e-2, rtol=5e-2), \
        "concat-path mismatch vs reference"

    # Split-accumulate path -- default on v5e / non-lane-aligned Dx.
    out_split = jax.block_until_ready(
        join_forward(x, m, w_bf, b2, use_concat=False))
    assert jnp.allclose(out_split, ref, atol=5e-2, rtol=5e-2), \
        "split-path mismatch vs reference"

    print("KERNEL_OK")
</pallas_src>

<mosaic_0001>
module attributes {stable_mosaic.version = 11 : i64} {
  func.func @_join_concat_kernel(%arg0: i32, %arg1: memref<16x128xf32, #tpu.memory_space<vmem>>, %arg2: memref<16x128xf32, #tpu.memory_space<vmem>>, %arg3: memref<256x128xbf16, #tpu.memory_space<vmem>>, %arg4: memref<1x128xf32, #tpu.memory_space<vmem>>, %arg5: memref<16x128xf32, #tpu.memory_space<vmem>>, %arg6: memref<16x256xbf16, #tpu.memory_space<vmem>>) attributes {dimension_semantics = [#tpu.dimension_semantics<parallel>], iteration_bounds = array<i64: 1>, scalar_prefetch = 0 : i64, scratch_operands = 1 : i64, tpu.core_type = #tpu.core_type<tc>, window_params = [{transform_indices = @transform_0, window_bounds = array<i64: 16, 128>}, {transform_indices = @transform_1, window_bounds = array<i64: 16, 128>}, {pipeline_mode = #tpu.pipeline_mode<synchronous>, transform_indices = @transform_2, window_bounds = array<i64: 256, 128>}, {pipeline_mode = #tpu.pipeline_mode<synchronous>, transform_indices = @transform_3, window_bounds = array<i64: 1, 128>}, {transform_indices = @transform_4, window_bounds = array<i64: 16, 128>}]} {
    %c0 = arith.constant 0 : index
    %c0_0 = arith.constant 0 : index
    %0 = vector.load %arg1[%c0, %c0_0] : memref<16x128xf32, #tpu.memory_space<vmem>>, vector<16x128xf32>
    %1 = arith.truncf %0 : vector<16x128xf32> to vector<16x128xbf16>
    %c0_1 = arith.constant 0 : index
    %c0_2 = arith.constant 0 : index
    %2 = vector.load %arg6[%c0_1, %c0_2] : memref<16x256xbf16, #tpu.memory_space<vmem>>, vector<16x128xbf16>
    tpu.vector_store %arg6[%c0_1, %c0_2], %1 {strides = array<i32>} : memref<16x256xbf16, #tpu.memory_space<vmem>>, vector<16x128xbf16>,
    %c0_3 = arith.constant 0 : index
    %c0_4 = arith.constant 0 : index
    %3 = vector.load %arg2[%c0_3, %c0_4] : memref<16x128xf32, #tpu.memory_space<vmem>>, vector<16x128xf32>
    %4 = arith.truncf %3 : vector<16x128xf32> to vector<16x128xbf16>
    %c0_5 = arith.constant 0 : index
    %c128 = arith.constant 128 : index
    %5 = vector.load %arg6[%c0_5, %c128] : memref<16x256xbf16, #tpu.memory_space<vmem>>, vector<16x128xbf16>
    tpu.vector_store %arg6[%c0_5, %c128], %4 {strides = array<i32>} : memref<16x256xbf16, #tpu.memory_space<vmem>>, vector<16x128xbf16>,
    %c0_6 = arith.constant 0 : index
    %c0_7 = arith.constant 0 : index
    %6 = vector.load %arg6[%c0_6, %c0_7] : memref<16x256xbf16, #tpu.memory_space<vmem>>, vector<16x256xbf16>
    %c0_8 = arith.constant 0 : index
    %c0_9 = arith.constant 0 : index
    %7 = vector.load %arg3[%c0_8, %c0_9] : memref<256x128xbf16, #tpu.memory_space<vmem>>, vector<256x128xbf16>
    %cst = arith.constant dense<0.000000e+00> : vector<16x128xf32>
    %8 = tpu.matmul %6, %7, %cst {dimension_numbers = #tpu.dot_dimension_numbers<[1], [0], [0], [1], [0, 0, 1, 1], [], []>} : vector<16x256xbf16>, vector<256x128xbf16>, vector<16x128xf32> -> vector<16x128xf32>
    %c0_10 = arith.constant 0 : index
    %c0_11 = arith.constant 0 : index
    %9 = vector.load %arg4[%c0_10, %c0_11] : memref<1x128xf32, #tpu.memory_space<vmem>>, vector<1x128xf32>
    %10 = vector.broadcast %9 : vector<1x128xf32> to vector<16x128xf32>
    %11 = arith.addf %8, %10 : vector<16x128xf32>
    %cst_12 = arith.constant 0.000000e+00 : f32
    %12 = vector.broadcast %cst_12 : f32 to vector<16x128xf32>
    %13 = arith.maximumf %11, %12 : vector<16x128xf32>
    %c0_13 = arith.constant 0 : index
    %c0_14 = arith.constant 0 : index
    %14 = vector.load %arg5[%c0_13, %c0_14] : memref<16x128xf32, #tpu.memory_space<vmem>>, vector<16x128xf32>
    tpu.vector_store %arg5[%c0_13, %c0_14], %13 {strides = array<i32>} : memref<16x128xf32, #tpu.memory_space<vmem>>, vector<16x128xf32>,
    return
  }
  func.func @transform_0(%arg0: i32) -> (i32, i32) {
    %c0_i32 = arith.constant 0 : i32
    %c0_i32_0 = arith.constant 0 : i32
    return %arg0, %c0_i32 : i32, i32
  }
  func.func @transform_1(%arg0: i32) -> (i32, i32) {
    %c0_i32 = arith.constant 0 : i32
    %c0_i32_0 = arith.constant 0 : i32
    return %arg0, %c0_i32 : i32, i32
  }
  func.func @transform_2(%arg0: i32) -> (i32, i32) {
    %c0_i32 = arith.constant 0 : i32
    %c0_i32_0 = arith.constant 0 : i32
    %c0_i32_1 = arith.constant 0 : i32
    return %c0_i32, %c0_i32_0 : i32, i32
  }
  func.func @transform_3(%arg0: i32) -> (i32, i32) {
    %c0_i32 = arith.constant 0 : i32
    %c0_i32_0 = arith.constant 0 : i32
    %c0_i32_1 = arith.constant 0 : i32
    return %c0_i32, %c0_i32_0 : i32, i32
  }
  func.func @transform_4(%arg0: i32) -> (i32, i32) {
    %c0_i32 = arith.constant 0 : i32
    %c0_i32_0 = arith.constant 0 : i32
    return %arg0, %c0_i32 : i32, i32
  }
}

</mosaic_0001>

<llo_original>
// kernel: tpu_custom_call.1
$region0: #{tpu_custom_call.1}
  #allocation0 [shape = 'u32[]', space=smem, size = 0x4, offset = 0x4, fixed_abs, tag = 'smem constant byte address 0x4 - core index']
  #allocation1 [shape = 'u32[144,128]{1,0:T(1,128)}', space=vmem, size = 0x12000, scoped, tag = 'internal scratch']
  #allocation2 [shape = 'bf16[16,256]{1,0:T(16,128)(2,1)}', space=vmem, size = 0x2000, scoped, tag = 'scratch operand']
  %s0 = inlined_call_operand.hbm [shape: f32[16,128], index: 0, kind: input, shape index: {}]
  %s1 = inlined_call_operand.hbm [shape: f32[16,128], index: 1, kind: input, shape index: {}]
  %s2 = inlined_call_operand.hbm [shape: bf16[256,128], index: 2, kind: input, shape index: {}]
  %s3 = inlined_call_operand.vmem [shape: f32[1,128], index: 3, kind: input, shape index: {}]
  %s4 = inlined_call_operand.hbm [shape: f32[16,128], index: 4, kind: output, shape index: {}]
  %s5 = sld [smem:[#allocation0]]
  $region38: #{tpu_custom_call.1} parent=0
    _
  %s7 = ssub.s32 1, %s5
  %s8 = scalar_select 0, %s7, %s5
  $region1: #{tpu_custom_call.1} parent=0
    #allocation3 [shape = 'u8[8192]{0}', space=vmem, size = 0x2000, scoped, tag = 'input window, operand 0, single buffered']
    #allocation4 [shape = 's32[1]{0}', space=sflag, size = 0x4, scoped, tag = 'scoped memory for tpu_custom_call.1']
    #allocation5 [shape = 's32[1]{0}', space=sflag, size = 0x4, scoped, tag = 'scoped memory for tpu_custom_call.1']
    #allocation6 [shape = 'u8[8192]{0}', space=vmem, size = 0x2000, scoped, tag = 'input window, operand 1, single buffered']
    #allocation7 [shape = 's32[1]{0}', space=sflag, size = 0x4, scoped, tag = 'scoped memory for tpu_custom_call.1']
    #allocation8 [shape = 'u8[65536]{0}', space=vmem, size = 0x10000, scoped, tag = 'input window, operand 2, single buffered']
    #allocation9 [shape = 'u8[8192]{0}', space=vmem, size = 0x2000, scoped, tag = 'output window, operand 0, single buffered']
    %9 = vsyncpa [#allocation4], 0
    %10 = vsyncpa [#allocation7], 0
    %11 = vsyncpa [#allocation5], 0
    // Predicated region
    $region2: #{tpu_custom_call.1} parent=1 // pred_check
      _
    $region3: #{tpu_custom_call.1} parent=1 // pred_check_branch
      %13 = sbr.rel (0) target = $region5
    $region4: #{tpu_custom_call.1} parent=1 // pred_region
      %s15 = ssub.s32 256, 256
      %16 = vsyncadd [#allocation4], %s15
      %s17 = sshll.u32 [#allocation3], 4
      %s18 = int_to_ptr.vmem [resolvable:$true] %s17
      %23 = dma.hbm_to_vmem [thread:$0]  %s0, 256, %s18, [#allocation4], 128, 128, 8
    $region5: #{tpu_custom_call.1} parent=1 // pred_fallthru
      _
    // Predicated region
    $region6: #{tpu_custom_call.1} parent=1 // pred_check
      _
    $region7: #{tpu_custom_call.1} parent=1 // pred_check_branch
      %25 = sbr.rel (0) target = $region9
    $region8: #{tpu_custom_call.1} parent=1 // pred_region
      %s27 = ssub.s32 256, 256
      %28 = vsyncadd [#allocation7], %s27
      %s29 = sshll.u32 [#allocation6], 4
      %s30 = int_to_ptr.vmem [resolvable:$true] %s29
      %35 = dma.hbm_to_vmem [thread:$0]  %s1, 256, %s30, [#allocation7], 128, 128, 8
    $region9: #{tpu_custom_call.1} parent=1 // pred_fallthru
      _
    // Predicated region
    $region10: #{tpu_custom_call.1} parent=1 // pred_check
      _
    $region11: #{tpu_custom_call.1} parent=1 // pred_check_branch
      %37 = sbr.rel (0) target = $region13
    $region12: #{tpu_custom_call.1} parent=1 // pred_region
      %s39 = ssub.s32 2048, 2048
      %40 = vsyncadd [#allocation7], %s39
      %s41 = sshll.u32 [#allocation8], 4
      %s42 = int_to_ptr.vmem [resolvable:$true] %s41
      %47 = dma.hbm_to_vmem [thread:$0]  %s2, 2048, %s42, [#allocation7], 64, 64, 4
    $region13: #{tpu_custom_call.1} parent=1 // pred_fallthru
      _
    // Predicated region
    $region14: #{tpu_custom_call.1} parent=1 // pred_check
      _
    $region15: #{tpu_custom_call.1} parent=1 // pred_check_branch
      %49 = sbr.rel (0) target = $region17
    $region16: #{tpu_custom_call.1} parent=1 // pred_region
      _
    $region17: #{tpu_custom_call.1} parent=1 // pred_fallthru
      _
    // Predicated region
    $region18: #{tpu_custom_call.1} parent=1 // pred_check
      _
    $region19: #{tpu_custom_call.1} parent=1 // pred_check_branch
      %51 = sbr.rel (0) target = $region21
    $region20: #{tpu_custom_call.1} parent=1 // pred_region
      %52 = dma.done [#allocation4], 256
    $region21: #{tpu_custom_call.1} parent=1 // pred_fallthru
      _
    // Predicated region
    $region22: #{tpu_custom_call.1} parent=1 // pred_check
      _
    $region23: #{tpu_custom_call.1} parent=1 // pred_check_branch
      %54 = sbr.rel (0) target = $region25
    $region24: #{tpu_custom_call.1} parent=1 // pred_region
      %55 = dma.done [#allocation7], 256
    $region25: #{tpu_custom_call.1} parent=1 // pred_fallthru
      _
    // Predicated region
    $region26: #{tpu_custom_call.1} parent=1 // pred_check
      _
    $region27: #{tpu_custom_call.1} parent=1 // pred_check_branch
      %57 = sbr.rel (0) target = $region29
    $region28: #{tpu_custom_call.1} parent=1 // pred_region
      %58 = dma.done [#allocation7], 2048
    $region29: #{tpu_custom_call.1} parent=1 // pred_fallthru
      _
    %v60 = vld [vmem:[#allocation3] sm:$0xff]
    %v61 = vld [vmem:[#allocation3 + $0x8] sm:$0xff]
    %v62 = vpack.c.bf16 %v61, %v60
    %63 = vst [vmem:[#allocation2] sm:$0xff] %v62
    %v64 = vld [vmem:[#allocation6] sm:$0xff]
    %v65 = vld [vmem:[#allocation6 + $0x8] sm:$0xff]
    %v66 = vpack.c.bf16 %v65, %v64
    %67 = vst [vmem:[#allocation2 + $0x8] sm:$0xff] %v66
    %v68 = vld [vmem:[#allocation2] sm:$0xff]
    %v69 = vld [vmem:[#allocation2 + $0x8] sm:$0xff]
    %v70 = vld [vmem:[#allocation8] sm:$0xf]
    %v71 = vld [vmem:[#allocation8 + $0x4] sm:$0xf]
    %v72 = vld [vmem:[#allocation8 + $0x8] sm:$0xf]
    %v73 = vld [vmem:[#allocation8 + $0xc] sm:$0xf]
    %v74 = vld [vmem:[#allocation8 + $0x10] sm:$0xf]
    %v75 = vld [vmem:[#allocation8 + $0x14] sm:$0xf]
    %v76 = vld [vmem:[#allocation8 + $0x18] sm:$0xf]
    %v77 = vld [vmem:[#allocation8 + $0x1c] sm:$0xf]
    %v78 = vld [vmem:[#allocation8 + $0x20] sm:$0xf]
    %v79 = vld [vmem:[#allocation8 + $0x24] sm:$0xf]
    %v80 = vld [vmem:[#allocation8 + $0x28] sm:$0xf]
    %v81 = vld [vmem:[#allocation8 + $0x2c] sm:$0xf]
    %v82 = vld [vmem:[#allocation8 + $0x30] sm:$0xf]
    %v83 = vld [vmem:[#allocation8 + $0x34] sm:$0xf]
    %v84 = vld [vmem:[#allocation8 + $0x38] sm:$0xf]
    %v85 = vld [vmem:[#allocation8 + $0x3c] sm:$0xf]
    %v86 = vld [vmem:[#allocation8 + $0x40] sm:$0xf]
    %v87 = vld [vmem:[#allocation8 + $0x44] sm:$0xf]
    %v88 = vld [vmem:[#allocation8 + $0x48] sm:$0xf]
    %v89 = vld [vmem:[#allocation8 + $0x4c] sm:$0xf]
    %v90 = vld [vmem:[#allocation8 + $0x50] sm:$0xf]
    %v91 = vld [vmem:[#allocation8 + $0x54] sm:$0xf]
    %v92 = vld [vmem:[#allocation8 + $0x58] sm:$0xf]
    %v93 = vld [vmem:[#allocation8 + $0x5c] sm:$0xf]
    %v94 = vld [vmem:[#allocation8 + $0x60] sm:$0xf]
    %v95 = vld [vmem:[#allocation8 + $0x64] sm:$0xf]
    %v96 = vld [vmem:[#allocation8 + $0x68] sm:$0xf]
    %v97 = vld [vmem:[#allocation8 + $0x6c] sm:$0xf]
    %v98 = vld [vmem:[#allocation8 + $0x70] sm:$0xf]
    %v99 = vld [vmem:[#allocation8 + $0x74] sm:$0xf]
    %v100 = vld [vmem:[#allocation8 + $0x78] sm:$0xf]
    %v101 = vld [vmem:[#allocation8 + $0x7c] sm:$0xf]
    %v102 = vld [vmem:[%s3] sm:$0x1]
    %v104 = vlaneseq
    %v105 = vshrl.u32 %v104, 7
    %v106 = vsub.s32 0, %v105
    %v107 = vrot.slane %v102, %v106
    %v141 = vunpack.c.l.b16 %v70
    %v142 = vunpack.c.l.b16 %v71
    %v143 = vunpack.c.l.b16 %v72
    %v144 = vunpack.c.l.b16 %v73
    %v145 = vunpack.c.l.b16 %v74
    %v146 = vunpack.c.l.b16 %v75
    %v147 = vunpack.c.l.b16 %v76
    %v148 = vunpack.c.l.b16 %v77
    %v149 = vunpack.c.l.b16 %v78
    %v150 = vunpack.c.l.b16 %v79
    %v151 = vunpack.c.l.b16 %v80
    %v152 = vunpack.c.l.b16 %v81
    %v153 = vunpack.c.l.b16 %v82
    %v154 = vunpack.c.l.b16 %v83
    %v155 = vunpack.c.l.b16 %v84
    %v156 = vunpack.c.l.b16 %v85
    %v157 = vunpack.c.l.b16 %v86
    %v158 = vunpack.c.l.b16 %v87
    %v159 = vunpack.c.l.b16 %v88
    %v160 = vunpack.c.l.b16 %v89
    %v161 = vunpack.c.l.b16 %v90
    %v162 = vunpack.c.l.b16 %v91
    %v163 = vunpack.c.l.b16 %v92
    %v164 = vunpack.c.l.b16 %v93
    %v165 = vunpack.c.l.b16 %v94
    %v166 = vunpack.c.l.b16 %v95
    %v167 = vunpack.c.l.b16 %v96
    %v168 = vunpack.c.l.b16 %v97
    %v169 = vunpack.c.l.b16 %v98
    %v170 = vunpack.c.l.b16 %v99
    %v171 = vunpack.c.l.b16 %v100
    %v172 = vunpack.c.l.b16 %v101
    %v173 = vpack.c.b16 %v142, %v141
    %v174 = vpack.c.b16 %v144, %v143
    %v175 = vpack.c.b16 %v146, %v145
    %v176 = vpack.c.b16 %v148, %v147
    %v177 = vpack.c.b16 %v150, %v149
    %v178 = vpack.c.b16 %v152, %v151
    %v179 = vpack.c.b16 %v154, %v153
    %v180 = vpack.c.b16 %v156, %v155
    %v181 = vpack.c.b16 %v158, %v157
    %v182 = vpack.c.b16 %v160, %v159
    %v183 = vpack.c.b16 %v162, %v161
    %v184 = vpack.c.b16 %v164, %v163
    %v185 = vpack.c.b16 %v166, %v165
    %v186 = vpack.c.b16 %v168, %v167
    %v187 = vpack.c.b16 %v170, %v169
    %v188 = vpack.c.b16 %v172, %v171
    %205 = vmatprep.subr.bf16.mxu0 0
    %206 = vmatpush1.bf16.msra.mxu0 %v173
    %207 = vmatprep.subr.bf16.mxu0 0
    %208 = vmatpush1.bf16.msra.mxu0 %v174
    %209 = vmatprep.subr.bf16.mxu0 0
    %210 = vmatpush1.bf16.msra.mxu0 %v175
    %211 = vmatprep.subr.bf16.mxu0 0
    %212 = vmatpush1.bf16.msra.mxu0 %v176
    %213 = vmatprep.subr.bf16.mxu0 0
    %214 = vmatpush1.bf16.msra.mxu0 %v177
    %215 = vmatprep.subr.bf16.mxu0 0
    %216 = vmatpush1.bf16.msra.mxu0 %v178
    %217 = vmatprep.subr.bf16.mxu0 0
    %218 = vmatpush1.bf16.msra.mxu0 %v179
    %219 = vmatprep.subr.bf16.mxu0 0
    %220 = vmatpush1.bf16.msra.mxu0 %v180
    %221 = vmatprep.subr.bf16.mxu0 0
    %222 = vmatpush1.bf16.msra.mxu0 %v181
    %223 = vmatprep.subr.bf16.mxu0 0
    %224 = vmatpush1.bf16.msra.mxu0 %v182
    %225 = vmatprep.subr.bf16.mxu0 0
    %226 = vmatpush1.bf16.msra.mxu0 %v183
    %227 = vmatprep.subr.bf16.mxu0 0
    %228 = vmatpush1.bf16.msra.mxu0 %v184
    %229 = vmatprep.subr.bf16.mxu0 0
    %230 = vmatpush1.bf16.msra.mxu0 %v185
    %231 = vmatprep.subr.bf16.mxu0 0
    %232 = vmatpush1.bf16.msra.mxu0 %v186
    %233 = vmatprep.subr.bf16.mxu0 0
    %234 = vmatpush1.bf16.msra.mxu0 %v187
    %235 = vmatprep.subr.bf16.mxu0 0
    %236 = vmatpush1.bf16.msra.mxu0 %v188
    %237 = vmatprep.mubr.bf16.mxu0 %v69
    %238 = vmatmul.mubr.bf16.gmra.mrb[0].mxu0 %v68
    %v239 = vpop.f32.mrb[0].mxu0
    %v240 = vadd.f32 %v107, %v239
    %v241 = vpop.f32.mrb[0].mxu0
    %v242 = vpop.f32.mrb[0].mxu0
    %v243 = vadd.f32 %v107, %v242
    %v244 = vpop.f32.mrb[0].mxu0
    %245 = vdwg.mxu0
    %v246 = vmax.f32 %v240, 0.0
    %v247 = vmax.f32 %v243, 0.0
    %248 = vst [vmem:[#allocation9] sm:$0xff] %v246
    %249 = vst [vmem:[#allocation9 + $0x8] sm:$0xff] %v247
    // Predicated region
    $region30: #{tpu_custom_call.1} parent=1 // pred_check
      _
    $region31: #{tpu_custom_call.1} parent=1 // pred_check_branch
      %251 = sbr.rel (0) target = $region33
    $region32: #{tpu_custom_call.1} parent=1 // pred_region
      %s253 = ssub.s32 256, 256
      %254 = vsyncadd [#allocation5], %s253
      %s255 = sshll.u32 [#allocation9], 4
      %s256 = int_to_ptr.vmem [resolvable:$true] %s255
      %261 = dma.vmem_to_hbm [thread:$0]  %s256, 256, %s4, [#allocation5], 128, 128, 8
    $region33: #{tpu_custom_call.1} parent=1 // pred_fallthru
      _
    // Predicated region
    $region34: #{tpu_custom_call.1} parent=1 // pred_check
      _
    $region35: #{tpu_custom_call.1} parent=1 // pred_check_branch
      %263 = sbr.rel (0) target = $region37
    $region36: #{tpu_custom_call.1} parent=1 // pred_region
      %264 = dma.done [#allocation5], 256
    $region37: #{tpu_custom_call.1} parent=1 // pred_fallthru
      _
    %265 = vsyncpa [#allocation4], 1
    %266 = vsyncpa [#allocation7], 1
    %267 = vsyncpa [#allocation5], 1

</llo_original>
